<compile_context>
chip_gen: v7x
topology: tpu7x:2x2x1
jax: 0.10.0
libtpu: 0.0.40
codegen_flags: <defaults>
</compile_context>

<pallas_src>
import functools
import numpy as np
import jax
import jax.numpy as jnp
from jax import lax
from jax.experimental import pallas as pl
from jax.experimental.pallas import tpu as pltpu


def _round_up(x, m):
    return ((x + m - 1) // m) * m


def _make_positive_linear_kernel(*, square_in_kernel, has_bias, mask_k, tk,
                                 k_total, compute_dtype):
    """Builds the tiled kernel body with static configuration baked in."""

    def kernel(x_ref, w_ref, *rest):
        if has_bias:
            b_ref, o_ref, acc_ref = rest
        else:
            o_ref, acc_ref = rest

        k = pl.program_id(2)

        @pl.when(k == 0)
        def _():
            acc_ref[...] = jnp.zeros_like(acc_ref)

        xt = x_ref[...].astype(compute_dtype)
        wt = w_ref[...]
        if square_in_kernel:
            # Square in f32 (v5e VPU has no bf16), then downcast for the MXU.
            w32 = wt.astype(jnp.float32)
            wt = (w32 * w32).astype(compute_dtype)
        else:
            wt = wt.astype(compute_dtype)

        if mask_k:
            # K tail of an edge block holds stale VMEM data. Zero it on both
            # operands (applied AFTER the square so inf**2 is also masked).
            base = k * tk
            x_col = lax.broadcasted_iota(jnp.int32, xt.shape, 1) + base
            w_col = lax.broadcasted_iota(jnp.int32, wt.shape, 1) + base
            xt = jnp.where(x_col < k_total, xt, jnp.zeros_like(xt))
            wt = jnp.where(w_col < k_total, wt, jnp.zeros_like(wt))

        # Contract last axis of x with last axis of w2: no weight transpose.
        acc_ref[...] += lax.dot_general(
            xt, wt,
            dimension_numbers=(((1,), (1,)), ((), ())),
            preferred_element_type=jnp.float32,
        )

        @pl.when(k == pl.num_programs(2) - 1)
        def _():
            acc = acc_ref[...]
            if has_bias:
                acc = acc + b_ref[...].astype(jnp.float32)
            o_ref[...] = acc.astype(o_ref.dtype)

    return kernel


def positive_linear(x, log_weight, bias=None, *, tm=512, tn=512, tk=1024,
                    compute_dtype=None):
    """Pallas implementation of PositiveLinear.forward.

    x:          (B, in_features)
    log_weight: (out_features, in_features)
    bias:       optional (out_features,)
    returns     (B, out_features), dtype = x.dtype

    compute_dtype: MXU operand dtype. Default = x.dtype (exact semantics for
    f32 callers). Pass jnp.bfloat16 for the fast bf16 MXU path (f32 accumulate).
    tm/tn/tk are per-generation tunables; keep the double-buffered footprint
    <= ~48 MiB on v7x (64 MiB physical VMEM).
    """
    B, K = x.shape
    N, K2 = log_weight.shape
    assert K == K2, "in_features mismatch between input and weight"

    compute_dtype = (jnp.dtype(compute_dtype) if compute_dtype is not None
                     else jnp.dtype(x.dtype))

    # Align tiles to the (8, 128) layout requirement and clamp to problem size.
    tm_ = min(_round_up(tm, 8), _round_up(B, 8))
    tn_ = min(_round_up(tn, 128), _round_up(N, 128))
    tk_ = min(_round_up(tk, 128), _round_up(K, 128))

    m_tiles = pl.cdiv(B, tm_)
    n_tiles = pl.cdiv(N, tn_)
    k_tiles = pl.cdiv(K, tk_)
    grid = (m_tiles, n_tiles, k_tiles)

    mask_k = (K % tk_) != 0
    square_in_kernel = (m_tiles == 1)

    x_in = x if x.dtype == compute_dtype else x.astype(compute_dtype)
    if square_in_kernel:
        # Weight is streamed exactly once: square it in-kernel (one f32 read
        # from HBM, no extra precompute pass).
        w_in = log_weight
    else:
        # Hoist the square: otherwise every (j, k) weight tile is re-squared
        # once per M tile. One fused XLA elementwise pass over (N, K).
        w_in = (log_weight.astype(jnp.float32) ** 2).astype(compute_dtype)

    esize = jnp.dtype(compute_dtype).itemsize
    w_esize = jnp.dtype(w_in.dtype).itemsize
    out_esize = jnp.dtype(x.dtype).itemsize

    # Weight-streaming regime (single M tile): deepen the weight pipeline.
    w_buffers = 3 if (m_tiles == 1 and k_tiles >= 3) else 2

    # Scoped-VMEM budget: double-buffered x, w_buffers-deep weight, the output
    # (revisited across k -> single buffer), the f32 accumulator, plus the
    # in-kernel f32 w2 temporary when squaring inside the kernel.
    need = (2 * tm_ * tk_ * esize
            + w_buffers * tn_ * tk_ * w_esize
            + tm_ * tn_ * out_esize
            + tm_ * tn_ * 4)
    if square_in_kernel:
        need += tn_ * tk_ * 4
    if bias is not None:
        need += 2 * tn_ * 4
    vmem_limit = int(min(max(2 * need, 32 * 1024 * 1024), 48 * 1024 * 1024))

    flops = 2 * B * N * K + N * K + (B * N if bias is not None else 0)
    bytes_accessed = (B * K * esize + N * K * w_esize + B * N * out_esize
                      + (N * 4 if bias is not None else 0))
    cost = pl.CostEstimate(flops=flops, transcendentals=0,
                           bytes_accessed=bytes_accessed)

    cparams = pltpu.CompilerParams(
        dimension_semantics=("parallel", "parallel", "arbitrary"),
        vmem_limit_bytes=vmem_limit,
    )

    kernel = _make_positive_linear_kernel(
        square_in_kernel=square_in_kernel,
        has_bias=bias is not None,
        mask_k=mask_k,
        tk=tk_,
        k_total=K,
        compute_dtype=compute_dtype,
    )

    out_shape = jax.ShapeDtypeStruct((B, N), x.dtype)
    scratch = [pltpu.VMEM((tm_, tn_), jnp.float32)]

    x_spec = pl.BlockSpec((tm_, tk_), lambda i, j, k: (i, k))
    o_spec = pl.BlockSpec((tm_, tn_), lambda i, j, k: (i, j))

    def w_index(i, j, k):
        return (j, k)

    inputs = [x_in, w_in]
    extra_specs = []
    if bias is not None:
        inputs.append(bias.reshape(1, N).astype(jnp.float32))
        extra_specs.append(pl.BlockSpec((1, tn_), lambda i, j, k: (0, j)))

    def _build(w_spec):
        return pl.pallas_call(
            kernel,
            out_shape=out_shape,
            grid_spec=pltpu.PrefetchScalarGridSpec(
                num_scalar_prefetch=0,
                grid=grid,
                in_specs=[x_spec, w_spec] + extra_specs,
                out_specs=o_spec,
                scratch_shapes=scratch,
            ),
            compiler_params=cparams,
            cost_estimate=cost,
        )

    if w_buffers > 2:
        # Deeper buffering on the dominant (weight) DMA stream keeps HBM
        # saturated when the kernel is weight-bandwidth bound (small B).
        try:
            w_spec = pl.BlockSpec((tn_, tk_), w_index,
                                  pipeline_mode=pl.Buffered(w_buffers))
            return _build(w_spec)(*inputs)
        except Exception:
            # Fallback for jax versions without pipeline_mode / Buffered
            # lowering support: default double buffering.
            pass
    w_spec = pl.BlockSpec((tn_, tk_), w_index)
    return _build(w_spec)(*inputs)


def init_positive_linear_params(key, in_features, out_features, bias=False):
    """Deterministic re-implementation of PositiveLinear.reset_parameters."""
    kw, kb = jax.random.split(key)
    # xavier_uniform_: U(-a, a), a = sqrt(6 / (fan_in + fan_out))
    a = float(np.sqrt(6.0 / (in_features + out_features)))
    w = jax.random.uniform(
        kw, (out_features, in_features), jnp.float32, minval=-a, maxval=a
    )
    # .abs_().sqrt_()
    log_weight = jnp.sqrt(jnp.abs(w))
    if bias:
        fan_in = in_features
        bound = float(np.sqrt(1.0 / np.sqrt(fan_in)))
        b = jax.random.uniform(
            kb, (out_features,), jnp.float32, minval=-bound, maxval=bound
        )
    else:
        b = None
    return log_weight, b


if __name__ == "__main__":
    key = jax.random.PRNGKey(0)
    k_x, k_x2, k_p = jax.random.split(key, 3)

    # 1) Default module config (bias=False), small shapes.
    B, in_f, out_f = 8, 32, 16
    x = jax.random.normal(k_x, (B, in_f), jnp.float32)
    lw, b0 = init_positive_linear_params(k_p, in_f, out_f, bias=False)
    out = jax.block_until_ready(positive_linear(x, lw, b0))
    ref = x @ (lw ** 2).T
    np.testing.assert_allclose(np.asarray(out), np.asarray(ref),
                               rtol=1e-5, atol=1e-5)

    # 2) bias=True path.
    lw_b, b_b = init_positive_linear_params(k_p, in_f, out_f, bias=True)
    out_b = jax.block_until_ready(positive_linear(x, lw_b, b_b))
    ref_b = x @ (lw_b ** 2).T + b_b
    np.testing.assert_allclose(np.asarray(out_b), np.asarray(ref_b),
                               rtol=1e-5, atol=1e-5)

    # 3) Multi-M-tile config with K/N tails: exercises the hoisted square,
    #    the in-kernel K-tail mask, and masked edge-block writes (no padding).
    B2, in2, out2 = 48, 640, 200
    x2 = jax.random.normal(k_x, (B2, in2), jnp.float32)
    lw2, b2 = init_positive_linear_params(k_p, in2, out2, bias=True)
    out2_v = jax.block_until_ready(
        positive_linear(x2, lw2, b2, tm=16, tn=128, tk=256))
    ref2 = x2 @ (lw2 ** 2).T + b2
    np.testing.assert_allclose(np.asarray(out2_v), np.asarray(ref2),
                               rtol=1e-4, atol=1e-4)

    # 4) bf16 MXU fast path (opt-in). Compare against a reference built with
    #    the same operand rounding (square in f32, cast to bf16, f32 accumulate).
    out3 = jax.block_until_ready(
        positive_linear(x2, lw2, b2, compute_dtype=jnp.bfloat16))
    w2_bf = (lw2.astype(jnp.float32) ** 2).astype(jnp.bfloat16)
    ref3 = jnp.dot(x2.astype(jnp.bfloat16), w2_bf.T,
                   preferred_element_type=jnp.float32) + b2
    np.testing.assert_allclose(np.asarray(out3), np.asarray(ref3),
                               rtol=2e-2, atol=2e-2)

    # 5) Weight-streaming regime (single M tile, k_tiles >= 3): exercises the
    #    Buffered(3) weight pipeline and the K-tail mask with no bias.
    x5 = jax.random.normal(k_x2, (8, in2), jnp.float32)
    out5 = jax.block_until_ready(positive_linear(x5, lw2, None, tk=256))
    ref5 = x5 @ (lw2 ** 2).T
    np.testing.assert_allclose(np.asarray(out5), np.asarray(ref5),
                               rtol=1e-4, atol=1e-4)

    print("KERNEL_OK")
</pallas_src>

<mosaic_0001>
module attributes {stable_mosaic.version = 11 : i64} {
  func.func @kernel(%arg0: i32, %arg1: i32, %arg2: i32, %arg3: memref<8x128xf32, #tpu.memory_space<vmem>>, %arg4: memref<128x128xf32, #tpu.memory_space<vmem>>, %arg5: memref<8x128xf32, #tpu.memory_space<vmem>>, %arg6: memref<8x128xf32, #tpu.memory_space<vmem>>) attributes {dimension_semantics = [#tpu.dimension_semantics<parallel>, #tpu.dimension_semantics<parallel>, #tpu.dimension_semantics<arbitrary>], iteration_bounds = array<i64: 1, 1, 1>, scalar_prefetch = 0 : i64, scratch_operands = 1 : i64, tpu.core_type = #tpu.core_type<tc>, window_params = [{transform_indices = @transform_0, window_bounds = array<i64: 8, 128>}, {transform_indices = @transform_1, window_bounds = array<i64: 128, 128>}, {transform_indices = @transform_2, window_bounds = array<i64: 8, 128>}]} {
    %c0_i32 = arith.constant 0 : i32
    %0 = arith.cmpi eq, %arg2, %c0_i32 : i32
    %1 = arith.extui %0 : i1 to i32
    %c0_i32_0 = arith.constant 0 : i32
    %2 = arith.cmpi ne, %1, %c0_i32_0 : i32
    scf.if %2 {
      %cst_13 = arith.constant 0.000000e+00 : f32
      %28 = vector.broadcast %cst_13 : f32 to vector<8x128xf32>
      %c0_14 = arith.constant 0 : index
      %c0_15 = arith.constant 0 : index
      %29 = vector.load %arg6[%c0_14, %c0_15] : memref<8x128xf32, #tpu.memory_space<vmem>>, vector<8x128xf32>
      tpu.vector_store %arg6[%c0_14, %c0_15], %28 {strides = array<i32>} : memref<8x128xf32, #tpu.memory_space<vmem>>, vector<8x128xf32>,
    } else {
    }
    %c0 = arith.constant 0 : index
    %c0_1 = arith.constant 0 : index
    %3 = vector.load %arg3[%c0, %c0_1] : memref<8x128xf32, #tpu.memory_space<vmem>>, vector<8x128xf32>
    %c0_2 = arith.constant 0 : index
    %c0_3 = arith.constant 0 : index
    %4 = vector.load %arg4[%c0_2, %c0_3] : memref<128x128xf32, #tpu.memory_space<vmem>>, vector<128x128xf32>
    %5 = arith.mulf %4, %4 : vector<128x128xf32>
    %c128_i32 = arith.constant 128 : i32
    %6 = arith.muli %arg2, %c128_i32 : i32
    %7 = tpu.iota {dimensions = array<i32: 1>} : vector<8x128xi32>
    %8 = vector.broadcast %6 : i32 to vector<8x128xi32>
    %9 = arith.addi %7, %8 : vector<8x128xi32>
    %10 = tpu.iota {dimensions = array<i32: 1>} : vector<128x128xi32>
    %11 = vector.broadcast %6 : i32 to vector<128x128xi32>
    %12 = arith.addi %10, %11 : vector<128x128xi32>
    %c32_i32 = arith.constant 32 : i32
    %13 = vector.broadcast %c32_i32 : i32 to vector<8x128xi32>
    %14 = arith.cmpi slt, %9, %13 : vector<8x128xi32>
    %cst = arith.constant 0.000000e+00 : f32
    %15 = vector.broadcast %cst : f32 to vector<8x128xf32>
    %16 = arith.select %14, %3, %15 : vector<8x128xi1>, vector<8x128xf32>
    %c32_i32_4 = arith.constant 32 : i32
    %17 = vector.broadcast %c32_i32_4 : i32 to vector<128x128xi32>
    %18 = arith.cmpi slt, %12, %17 : vector<128x128xi32>
    %cst_5 = arith.constant 0.000000e+00 : f32
    %19 = vector.broadcast %cst_5 : f32 to vector<128x128xf32>
    %20 = arith.select %18, %5, %19 : vector<128x128xi1>, vector<128x128xf32>
    %c0_6 = arith.constant 0 : index
    %c0_7 = arith.constant 0 : index
    %21 = vector.load %arg6[%c0_6, %c0_7] : memref<8x128xf32, #tpu.memory_space<vmem>>, vector<8x128xf32>
    %cst_8 = arith.constant dense<0.000000e+00> : vector<8x128xf32>
    %22 = tpu.matmul %16, %20, %cst_8 {dimension_numbers = #tpu.dot_dimension_numbers<[1], [1], [0], [0], [0, 0, 1, 0], [], []>} : vector<8x128xf32>, vector<128x128xf32>, vector<8x128xf32> -> vector<8x128xf32>
    %23 = arith.addf %21, %22 : vector<8x128xf32>
    %c0_9 = arith.constant 0 : index
    %c0_10 = arith.constant 0 : index
    %24 = vector.load %arg6[%c0_9, %c0_10] : memref<8x128xf32, #tpu.memory_space<vmem>>, vector<8x128xf32>
    tpu.vector_store %arg6[%c0_9, %c0_10], %23 {strides = array<i32>} : memref<8x128xf32, #tpu.memory_space<vmem>>, vector<8x128xf32>,
    %c0_i32_11 = arith.constant 0 : i32
    %25 = arith.cmpi eq, %arg2, %c0_i32_11 : i32
    %26 = arith.extui %25 : i1 to i32
    %c0_i32_12 = arith.constant 0 : i32
    %27 = arith.cmpi ne, %26, %c0_i32_12 : i32
    scf.if %27 {
      %c0_13 = arith.constant 0 : index
      %c0_14 = arith.constant 0 : index
      %28 = vector.load %arg6[%c0_13, %c0_14] : memref<8x128xf32, #tpu.memory_space<vmem>>, vector<8x128xf32>
      %c0_15 = arith.constant 0 : index
      %c0_16 = arith.constant 0 : index
      %29 = vector.load %arg5[%c0_15, %c0_16] : memref<8x128xf32, #tpu.memory_space<vmem>>, vector<8x128xf32>
      tpu.vector_store %arg5[%c0_15, %c0_16], %28 {strides = array<i32>} : memref<8x128xf32, #tpu.memory_space<vmem>>, vector<8x128xf32>,
    } else {
    }
    return
  }
  func.func @transform_0(%arg0: i32, %arg1: i32, %arg2: i32) -> (i32, i32) {
    %c0_i32 = arith.constant 0 : i32
    return %arg0, %arg2 : i32, i32
  }
  func.func @transform_1(%arg0: i32, %arg1: i32, %arg2: i32) -> (i32, i32) {
    %c0_i32 = arith.constant 0 : i32
    return %arg1, %arg2 : i32, i32
  }
  func.func @transform_2(%arg0: i32, %arg1: i32, %arg2: i32) -> (i32, i32) {
    %c0_i32 = arith.constant 0 : i32
    return %arg0, %arg1 : i32, i32
  }
}

</mosaic_0001>

<llo_original>
// kernel: tpu_custom_call.1
$region0: #{tpu_custom_call.1}
  #allocation0 [shape = 'u32[]', space=smem, size = 0x4, offset = 0x4, fixed_abs, tag = 'smem constant byte address 0x4 - core index']
  #allocation1 [shape = 'u32[144,128]{1,0:T(1,128)}', space=vmem, size = 0x12000, scoped, tag = 'internal scratch']
  #allocation2 [shape = 'f32[8,128]{1,0:T(8,128)}', space=vmem, size = 0x1000, scoped, tag = 'scratch operand']
  %s0 = inlined_call_operand.hbm [shape: f32[8,32], index: 0, kind: input, shape index: {}]
  %s1 = inlined_call_operand.hbm [shape: f32[16,32], index: 1, kind: input, shape index: {}]
  %s2 = inlined_call_operand.hbm [shape: f32[8,16], index: 2, kind: output, shape index: {}]
  %s3 = sld [smem:[#allocation0]]
  $region34: #{tpu_custom_call.1} parent=0
    _
  %s5 = ssub.s32 1, %s3
  %s6 = scalar_select 0, %s5, %s3
  $region1: #{tpu_custom_call.1} parent=0
    #allocation3 [shape = 'u8[4096]{0}', space=vmem, size = 0x1000, scoped, tag = 'input window, operand 0, single buffered']
    #allocation4 [shape = 's32[1]{0}', space=sflag, size = 0x4, scoped, tag = 'scoped memory for tpu_custom_call.1']
    #allocation5 [shape = 's32[1]{0}', space=sflag, size = 0x4, scoped, tag = 'scoped memory for tpu_custom_call.1']
    #allocation6 [shape = 'u8[65536]{0}', space=vmem, size = 0x10000, scoped, tag = 'input window, operand 1, single buffered']
    #allocation7 [shape = 's32[1]{0}', space=sflag, size = 0x4, scoped, tag = 'scoped memory for tpu_custom_call.1']
    #allocation8 [shape = 'u8[4096]{0}', space=vmem, size = 0x1000, scoped, tag = 'output window, operand 0, single buffered']
    %7 = vsyncpa [#allocation4], 0
    %8 = vsyncpa [#allocation7], 0
    %9 = vsyncpa [#allocation5], 0
    // Predicated region
    $region2: #{tpu_custom_call.1} parent=1 // pred_check
      _
    $region3: #{tpu_custom_call.1} parent=1 // pred_check_branch
      %11 = sbr.rel (0) target = $region5
    $region4: #{tpu_custom_call.1} parent=1 // pred_region
      %s13 = ssub.s32 128, 128
      %14 = vsyncadd [#allocation4], %s13
      %s16 = sshll.u32 [#allocation3], 4
      %s17 = int_to_ptr.vmem [resolvable:$true] %s16
      %19 = dma.hbm_to_vmem [thread:$0]  %s0, 128, %s17, [#allocation4]
    $region5: #{tpu_custom_call.1} parent=1 // pred_fallthru
      _
    // Predicated region
    $region6: #{tpu_custom_call.1} parent=1 // pred_check
      _
    $region7: #{tpu_custom_call.1} parent=1 // pred_check_branch
      %21 = sbr.rel (0) target = $region9
    $region8: #{tpu_custom_call.1} parent=1 // pred_region
      %s23 = ssub.s32 2048, 256
      %24 = vsyncadd [#allocation7], %s23
      %s25 = sshll.u32 [#allocation6], 4
      %s26 = int_to_ptr.vmem [resolvable:$true] %s25
      %31 = dma.hbm_to_vmem [thread:$0]  %s1, 256, %s26, [#allocation7], 128, 128, 8
    $region9: #{tpu_custom_call.1} parent=1 // pred_fallthru
      _
    // Predicated region
    $region10: #{tpu_custom_call.1} parent=1 // pred_check
      _
    $region11: #{tpu_custom_call.1} parent=1 // pred_check_branch
      %33 = sbr.rel (0) target = $region13
    $region12: #{tpu_custom_call.1} parent=1 // pred_region
      %34 = dma.done [#allocation4], 128
    $region13: #{tpu_custom_call.1} parent=1 // pred_fallthru
      _
    // Predicated region
    $region14: #{tpu_custom_call.1} parent=1 // pred_check
      _
    $region15: #{tpu_custom_call.1} parent=1 // pred_check_branch
      %36 = sbr.rel (0) target = $region17
    $region16: #{tpu_custom_call.1} parent=1 // pred_region
      %37 = dma.done [#allocation7], 2048
    $region17: #{tpu_custom_call.1} parent=1 // pred_fallthru
      _
    %p38 = scmp.eq.s32.totalorder 0, 0
    // Predicated region
    $region18: #{tpu_custom_call.1} parent=1 // pred_check
      %p39 = pneg %p38
    $region19: #{tpu_custom_call.1} parent=1 // pred_check_branch
      %41 = sbr.rel (%p39) target = $region21
    $region20: #{tpu_custom_call.1} parent=1 // pred_region
      %42 = vst [vmem:[#allocation2] sm:$0xff] 0.0
    $region21: #{tpu_custom_call.1} parent=1 // pred_fallthru
      _
    %v43 = vld [vmem:[#allocation3] sm:$0xff]
    %v44 = vld [vmem:[#allocation6] sm:$0xff]
    %v45 = vld [vmem:[#allocation6 + $0x8] sm:$0xff]
    %v46 = vld [vmem:[#allocation6 + $0x10] sm:$0xff]
    %v47 = vld [vmem:[#allocation6 + $0x18] sm:$0xff]
    %v48 = vld [vmem:[#allocation6 + $0x20] sm:$0xff]
    %v49 = vld [vmem:[#allocation6 + $0x28] sm:$0xff]
    %v50 = vld [vmem:[#allocation6 + $0x30] sm:$0xff]
    %v51 = vld [vmem:[#allocation6 + $0x38] sm:$0xff]
    %v52 = vld [vmem:[#allocation6 + $0x40] sm:$0xff]
    %v53 = vld [vmem:[#allocation6 + $0x48] sm:$0xff]
    %v54 = vld [vmem:[#allocation6 + $0x50] sm:$0xff]
    %v55 = vld [vmem:[#allocation6 + $0x58] sm:$0xff]
    %v56 = vld [vmem:[#allocation6 + $0x60] sm:$0xff]
    %v57 = vld [vmem:[#allocation6 + $0x68] sm:$0xff]
    %v58 = vld [vmem:[#allocation6 + $0x70] sm:$0xff]
    %v59 = vld [vmem:[#allocation6 + $0x78] sm:$0xff]
    %v60 = vmul.f32 %v44, %v44
    %v61 = vmul.f32 %v45, %v45
    %v62 = vmul.f32 %v46, %v46
    %v63 = vmul.f32 %v47, %v47
    %v64 = vmul.f32 %v48, %v48
    %v65 = vmul.f32 %v49, %v49
    %v66 = vmul.f32 %v50, %v50
    %v67 = vmul.f32 %v51, %v51
    %v68 = vmul.f32 %v52, %v52
    %v69 = vmul.f32 %v53, %v53
    %v70 = vmul.f32 %v54, %v54
    %v71 = vmul.f32 %v55, %v55
    %v72 = vmul.f32 %v56, %v56
    %v73 = vmul.f32 %v57, %v57
    %v74 = vmul.f32 %v58, %v58
    %v75 = vmul.f32 %v59, %v59
    %s76 = smul.u32 0, 128
    %v77 = vlaneseq
    %v78 = vand.u32 %v77, 127
    %v79 = vstv %s76
    %v80 = vadd.s32 %v78, %v79
    %vm81 = vcmp.lt.s32.totalorder %v80, 32
    %v82 = vsel %vm81, %v43, 0.0
    %v83 = vsel %vm81, %v60, 0.0
    %v84 = vsel %vm81, %v61, 0.0
    %v85 = vsel %vm81, %v62, 0.0
    %v86 = vsel %vm81, %v63, 0.0
    %v87 = vsel %vm81, %v64, 0.0
    %v88 = vsel %vm81, %v65, 0.0
    %v89 = vsel %vm81, %v66, 0.0
    %v90 = vsel %vm81, %v67, 0.0
    %v91 = vsel %vm81, %v68, 0.0
    %v92 = vsel %vm81, %v69, 0.0
    %v93 = vsel %vm81, %v70, 0.0
    %v94 = vsel %vm81, %v71, 0.0
    %v95 = vsel %vm81, %v72, 0.0
    %v96 = vsel %vm81, %v73, 0.0
    %v97 = vsel %vm81, %v74, 0.0
    %v98 = vsel %vm81, %v75, 0.0
    %v99 = vld [vmem:[#allocation2] sm:$0xff]
    %100 = vmatprep.subr.mxu0 0.0
    %101 = vmatpush1.xpose.msra.mxu0 %v83
    %102 = vmatprep.subr.mxu0 0.0
    %103 = vmatpush1.xpose.msra.mxu0 %v84
    %104 = vmatprep.subr.mxu0 0.0
    %105 = vmatpush1.xpose.msra.mxu0 %v85
    %106 = vmatprep.subr.mxu0 0.0
    %107 = vmatpush1.xpose.msra.mxu0 %v86
    %108 = vmatprep.subr.mxu0 0.0
    %109 = vmatpush1.xpose.msra.mxu0 %v87
    %110 = vmatprep.subr.mxu0 0.0
    %111 = vmatpush1.xpose.msra.mxu0 %v88
    %112 = vmatprep.subr.mxu0 0.0
    %113 = vmatpush1.xpose.msra.mxu0 %v89
    %114 = vmatprep.subr.mxu0 0.0
    %115 = vmatpush1.xpose.msra.mxu0 %v90
    %116 = vmatprep.subr.mxu0 0.0
    %117 = vmatpush1.xpose.msra.mxu0 %v91
    %118 = vmatprep.subr.mxu0 0.0
    %119 = vmatpush1.xpose.msra.mxu0 %v92
    %120 = vmatprep.subr.mxu0 0.0
    %121 = vmatpush1.xpose.msra.mxu0 %v93
    %122 = vmatprep.subr.mxu0 0.0
    %123 = vmatpush1.xpose.msra.mxu0 %v94
    %124 = vmatprep.subr.mxu0 0.0
    %125 = vmatpush1.xpose.msra.mxu0 %v95
    %126 = vmatprep.subr.mxu0 0.0
    %127 = vmatpush1.xpose.msra.mxu0 %v96
    %128 = vmatprep.subr.mxu0 0.0
    %129 = vmatpush1.xpose.msra.mxu0 %v97
    %130 = vmatprep.subr.mxu0 0.0
    %131 = vmatpush1.xpose.msra.mxu0 %v98
    %132 = vmatprep.subr.mxu0 0.0
    %133 = vmatpush1.xpose.msra.mxu0 0.0
    %134 = vmatprep.subr.mxu0 0.0
    %135 = vmatpush1.xpose.msra.mxu0 0.0
    %136 = vmatprep.subr.mxu0 0.0
    %137 = vmatpush1.xpose.msra.mxu0 0.0
    %138 = vmatprep.subr.mxu0 0.0
    %139 = vmatpush1.xpose.msra.mxu0 0.0
    %140 = vmatprep.subr.mxu0 0.0
    %141 = vmatpush1.xpose.msra.mxu0 0.0
    %142 = vmatprep.subr.mxu0 0.0
    %143 = vmatpush1.xpose.msra.mxu0 0.0
    %144 = vmatprep.subr.mxu0 0.0
    %145 = vmatpush1.xpose.msra.mxu0 0.0
    %146 = vmatprep.subr.mxu0 0.0
    %147 = vmatpush1.xpose.msra.mxu0 0.0
    %148 = vmatprep.subr.mxu0 0.0
    %149 = vmatpush1.xpose.msra.mxu0 0.0
    %150 = vmatprep.subr.mxu0 0.0
    %151 = vmatpush1.xpose.msra.mxu0 0.0
    %152 = vmatprep.subr.mxu0 0.0
    %153 = vmatpush1.xpose.msra.mxu0 0.0
    %154 = vmatprep.subr.mxu0 0.0
    %155 = vmatpush1.xpose.msra.mxu0 0.0
    %156 = vmatprep.subr.mxu0 0.0
    %157 = vmatpush1.xpose.msra.mxu0 0.0
    %158 = vmatprep.subr.mxu0 0.0
    %159 = vmatpush1.xpose.msra.mxu0 0.0
    %160 = vmatprep.subr.mxu0 0.0
    %161 = vmatpush1.xpose.msra.mxu0 0.0
    %162 = vmatprep.subr.mxu0 0.0
    %163 = vmatpush1.xpose.msra.mxu0 0.0
    %164 = vmatprep.mubr.f32.mxu0 0.0
    %165 = vmatmul.mubr.f32.gmra.mrb[0].mxu0 %v82
    %v166 = vpop.f32.mrb[0].mxu0
    %v167 = vadd.f32 0.0, %v166
    %v168 = vpop.f32.mrb[0].mxu0
    %169 = vdwg.mxu0
    %v170 = vadd.f32 %v99, %v167
    %171 = vst [vmem:[#allocation2] sm:$0xff] %v170
    // Predicated region
    $region22: #{tpu_custom_call.1} parent=1 // pred_check
      %p172 = pneg %p38
    $region23: #{tpu_custom_call.1} parent=1 // pred_check_branch
      %174 = sbr.rel (%p172) target = $region25
    $region24: #{tpu_custom_call.1} parent=1 // pred_region
      %v175 = vld [vmem:[#allocation2] sm:$0xff]
      %176 = vst [vmem:[#allocation8] sm:$0xff] %v175
    $region25: #{tpu_custom_call.1} parent=1 // pred_fallthru
      _
    // Predicated region
    $region26: #{tpu_custom_call.1} parent=1 // pred_check
      _
    $region27: #{tpu_custom_call.1} parent=1 // pred_check_branch
      %178 = sbr.rel (0) target = $region29
    $region28: #{tpu_custom_call.1} parent=1 // pred_region
      %s180 = ssub.s32 128, 128
      %181 = vsyncadd [#allocation5], %s180
      %s183 = sshll.u32 [#allocation8], 4
      %s184 = int_to_ptr.vmem [resolvable:$true] %s183
      %186 = dma.vmem_to_hbm [thread:$0]  %s184, 128, %s2, [#allocation5]
    $region29: #{tpu_custom_call.1} parent=1 // pred_fallthru
      _
    // Predicated region
    $region30: #{tpu_custom_call.1} parent=1 // pred_check
      _
    $region31: #{tpu_custom_call.1} parent=1 // pred_check_branch
      %188 = sbr.rel (0) target = $region33
    $region32: #{tpu_custom_call.1} parent=1 // pred_region
      %189 = dma.done [#allocation5], 128
    $region33: #{tpu_custom_call.1} parent=1 // pred_fallthru
      _
    %190 = vsyncpa [#allocation4], 1
    %191 = vsyncpa [#allocation7], 1
    %192 = vsyncpa [#allocation5], 1

</llo_original>
